<compile_context>
chip_gen: v7x
topology: tpu7x:2x2x1
jax: 0.10.0
libtpu: 0.0.40
codegen_flags: <defaults>
</compile_context>

<pallas_src>
import functools

import jax
import jax.numpy as jnp
from jax import lax
from jax.experimental import pallas as pl
from jax.experimental.pallas import tpu as pltpu


def rnn_kernel(x_ref, wih_ref, b_ref, whh_ref, wout_ref, bout_ref,
               out_ref, xw_ref):
    """Fused input projection + serial RNN recurrence + output head.

    x_ref   : (T*B, D)  raw inputs, time-major rows (row t*B + b == inputs[t, b])
    wih_ref : (D, H)    W_ih^T
    b_ref   : (1, H)    b_ih + b_hh (pre-summed once at param-prep time)
    whh_ref : (H, H)    W_hh^T
    wout_ref: (H, Cp)   W_out^T padded with zero columns up to Cp (128 lanes)
    bout_ref: (1, Cp)   b_out padded with -1e30 (padded cols vanish in softmax)
    out_ref : (B, Cp)   lane-dense log-softmax output (wrapper slices [:, :C])
    xw_ref  : (T*B, H)  VMEM scratch holding the hoisted input projection
    """
    TB, _ = x_ref.shape
    H = whh_ref.shape[0]
    B = out_ref.shape[0]
    T = TB // B

    # Fused, non-sequential input projection: ONE (T*B, D) @ (D, H) MXU push.
    # No HBM round-trip for xw -- it lives in a VMEM scratch for the loop.
    xw_ref[...] = (jnp.dot(x_ref[...], wih_ref[...],
                           preferred_element_type=jnp.float32)
                   + b_ref[...])

    whh = whh_ref[...]                              # load once, reused every step
    h = jnp.zeros((B, H), jnp.float32)

    if T <= 16:
        # Full unroll with *static* ref slices (zero-cost views, LLO visibility).
        for t in range(T):
            xt = xw_ref[t * B:(t + 1) * B, :]
            h = jnp.maximum(
                xt + jnp.dot(h, whh, preferred_element_type=jnp.float32), 0.0)
    else:
        # Long sequences: bounded unroll to avoid vreg-spill (review guard).
        def step(t, h):
            xt = xw_ref[pl.ds(pl.multiple_of(t * B, B), B), :]
            return jnp.maximum(
                xt + jnp.dot(h, whh, preferred_element_type=jnp.float32), 0.0)
        h = lax.fori_loop(0, T, step, h, unroll=4)

    # Output head (lane-dense, Cp = 128 columns) + max-stabilized log-softmax.
    logits = (jnp.dot(h, wout_ref[...], preferred_element_type=jnp.float32)
              + bout_ref[...])                      # (B, Cp)
    m = jnp.max(logits, axis=-1, keepdims=True)
    lse = m + jnp.log(jnp.sum(jnp.exp(logits - m), axis=-1, keepdims=True))
    out_ref[...] = (logits - lse).astype(out_ref.dtype)


def prepare_params(w_ih, w_hh, b_ih, b_hh, w_out, b_out, pad_cols=128):
    """One-time weight prep (OUTSIDE the jitted per-call path).

    Transposes, pre-sums the biases and lane-pads the output head so the
    per-call graph is: free reshape -> one pallas_call -> tiny slice.
    """
    H, D = w_ih.shape
    C = w_out.shape[0]
    cp = max(pad_cols, C)

    wih_t = jnp.asarray(w_ih, jnp.float32).T                         # (D, H)
    bias = (jnp.asarray(b_ih, jnp.float32)
            + jnp.asarray(b_hh, jnp.float32)).reshape(1, H)          # (1, H)
    whh_t = jnp.asarray(w_hh, jnp.float32).T                         # (H, H)
    wout_pad = jnp.zeros((H, cp), jnp.float32).at[:, :C].set(
        jnp.asarray(w_out, jnp.float32).T)                           # (H, Cp)
    bout_pad = jnp.full((1, cp), -1e30, jnp.float32).at[0, :C].set(
        jnp.asarray(b_out, jnp.float32))                             # (1, Cp)
    return (wih_t, bias, whh_t, wout_pad, bout_pad), C


@functools.partial(jax.jit, static_argnames=("num_classes",))
def rnn_forward(inputs, wih_t, bias, whh_t, wout_pad, bout_pad, *, num_classes):
    """inputs: (T, B, D) float32. Returns (B, num_classes) log-probabilities."""
    T, B, D = inputs.shape
    H = whh_t.shape[0]
    Cp = wout_pad.shape[1]

    # Row-major collapse of the leading dims is a free bitcast, not a copy.
    x2 = inputs.astype(jnp.float32).reshape(T * B, D)

    out_pad = pl.pallas_call(
        rnn_kernel,
        out_shape=jax.ShapeDtypeStruct((B, Cp), jnp.float32),
        grid=(1,),
        in_specs=[
            pl.BlockSpec((T * B, D), lambda i: (0, 0)),   # whole input slab in VMEM
            pl.BlockSpec((D, H), lambda i: (0, 0)),
            pl.BlockSpec((1, H), lambda i: (0, 0)),
            pl.BlockSpec((H, H), lambda i: (0, 0)),
            pl.BlockSpec((H, Cp), lambda i: (0, 0)),
            pl.BlockSpec((1, Cp), lambda i: (0, 0)),
        ],
        out_specs=pl.BlockSpec((B, Cp), lambda i: (0, 0)),
        scratch_shapes=[pltpu.VMEM((T * B, H), jnp.float32)],
        compiler_params=pltpu.CompilerParams(
            dimension_semantics=("arbitrary",)),
    )(x2, wih_t, bias, whh_t, wout_pad, bout_pad)

    # Padded columns carry -1e30 logits -> slice back to the real classes.
    return out_pad[:, :num_classes]


def rnn_reference(inputs, w_ih, w_hh, b_ih, b_hh, w_out, b_out):
    """Pure-JAX reference mirroring the PyTorch forward."""
    T, B, D = inputs.shape
    H = w_hh.shape[0]

    def step(h, x_t):
        h_new = jnp.maximum(x_t @ w_ih.T + b_ih + h @ w_hh.T + b_hh, 0.0)
        return h_new, None

    h_last, _ = lax.scan(step, jnp.zeros((B, H), jnp.float32), inputs)
    logits = h_last @ w_out.T + b_out                       # (B, 5)
    return jax.nn.log_softmax(logits, axis=1)


if __name__ == "__main__":
    # Small shapes consistent with the module: seq=8, batch=2, input_dim=16, h=32.
    T, B, D, H, C = 8, 2, 16, 32, 5

    key = jax.random.PRNGKey(0)
    ks = jax.random.split(key, 8)
    scale_rnn = 1.0 / jnp.sqrt(H)
    scale_lin = 1.0 / jnp.sqrt(H)

    inputs = jax.random.normal(ks[0], (T, B, D), jnp.float32)
    w_ih = jax.random.uniform(ks[1], (H, D), jnp.float32, -scale_rnn, scale_rnn)
    w_hh = jax.random.uniform(ks[2], (H, H), jnp.float32, -scale_rnn, scale_rnn)
    b_ih = jax.random.uniform(ks[3], (H,), jnp.float32, -scale_rnn, scale_rnn)
    b_hh = jax.random.uniform(ks[4], (H,), jnp.float32, -scale_rnn, scale_rnn)
    w_out = jax.random.uniform(ks[5], (C, H), jnp.float32, -scale_lin, scale_lin)
    b_out = jax.random.uniform(ks[6], (C,), jnp.float32, -scale_lin, scale_lin)

    # One-time weight prep (transposes / bias pre-sum / output lane padding).
    params, n_classes = prepare_params(w_ih, w_hh, b_ih, b_hh, w_out, b_out)

    out = rnn_forward(inputs, *params, num_classes=n_classes)
    out = jax.block_until_ready(out)

    ref = rnn_reference(inputs, w_ih, w_hh, b_ih, b_hh, w_out, b_out)
    assert out.shape == (B, C)
    assert jnp.allclose(out, ref, atol=1e-5, rtol=1e-5), (out, ref)

    print("KERNEL_OK")
</pallas_src>

<mosaic_0001>
module attributes {stable_mosaic.version = 11 : i64} {
  func.func @rnn_kernel(%arg0: i32, %arg1: memref<16x16xf32, #tpu.memory_space<vmem>>, %arg2: memref<16x32xf32, #tpu.memory_space<vmem>>, %arg3: memref<1x32xf32, #tpu.memory_space<vmem>>, %arg4: memref<32x32xf32, #tpu.memory_space<vmem>>, %arg5: memref<32x128xf32, #tpu.memory_space<vmem>>, %arg6: memref<1x128xf32, #tpu.memory_space<vmem>>, %arg7: memref<2x128xf32, #tpu.memory_space<vmem>>, %arg8: memref<16x32xf32, #tpu.memory_space<vmem>>) attributes {dimension_semantics = [#tpu.dimension_semantics<arbitrary>], iteration_bounds = array<i64: 1>, scalar_prefetch = 0 : i64, scratch_operands = 1 : i64, tpu.core_type = #tpu.core_type<tc>, window_params = [{pipeline_mode = #tpu.pipeline_mode<synchronous>, transform_indices = @transform_0, window_bounds = array<i64: 16, 16>}, {pipeline_mode = #tpu.pipeline_mode<synchronous>, transform_indices = @transform_1, window_bounds = array<i64: 16, 32>}, {pipeline_mode = #tpu.pipeline_mode<synchronous>, transform_indices = @transform_2, window_bounds = array<i64: 1, 32>}, {pipeline_mode = #tpu.pipeline_mode<synchronous>, transform_indices = @transform_3, window_bounds = array<i64: 32, 32>}, {pipeline_mode = #tpu.pipeline_mode<synchronous>, transform_indices = @transform_4, window_bounds = array<i64: 32, 128>}, {pipeline_mode = #tpu.pipeline_mode<synchronous>, transform_indices = @transform_5, window_bounds = array<i64: 1, 128>}, {pipeline_mode = #tpu.pipeline_mode<synchronous>, transform_indices = @transform_6, window_bounds = array<i64: 2, 128>}]} {
    %c0 = arith.constant 0 : index
    %c0_0 = arith.constant 0 : index
    %0 = vector.load %arg1[%c0, %c0_0] : memref<16x16xf32, #tpu.memory_space<vmem>>, vector<16x16xf32>
    %c0_1 = arith.constant 0 : index
    %c0_2 = arith.constant 0 : index
    %1 = vector.load %arg2[%c0_1, %c0_2] : memref<16x32xf32, #tpu.memory_space<vmem>>, vector<16x32xf32>
    %cst = arith.constant dense<0.000000e+00> : vector<16x32xf32>
    %2 = tpu.matmul %0, %1, %cst {dimension_numbers = #tpu.dot_dimension_numbers<[1], [0], [0], [1], [0, 0, 1, 1], [], []>} : vector<16x16xf32>, vector<16x32xf32>, vector<16x32xf32> -> vector<16x32xf32>
    %c0_3 = arith.constant 0 : index
    %c0_4 = arith.constant 0 : index
    %3 = vector.load %arg3[%c0_3, %c0_4] : memref<1x32xf32, #tpu.memory_space<vmem>>, vector<1x32xf32>
    %4 = vector.broadcast %3 : vector<1x32xf32> to vector<16x32xf32>
    %5 = arith.addf %2, %4 : vector<16x32xf32>
    %c0_5 = arith.constant 0 : index
    %c0_6 = arith.constant 0 : index
    %6 = vector.load %arg8[%c0_5, %c0_6] : memref<16x32xf32, #tpu.memory_space<vmem>>, vector<16x32xf32>
    tpu.vector_store %arg8[%c0_5, %c0_6], %5 {strides = array<i32>} : memref<16x32xf32, #tpu.memory_space<vmem>>, vector<16x32xf32>,
    %c0_7 = arith.constant 0 : index
    %c0_8 = arith.constant 0 : index
    %7 = vector.load %arg4[%c0_7, %c0_8] : memref<32x32xf32, #tpu.memory_space<vmem>>, vector<32x32xf32>
    %cst_9 = arith.constant 0.000000e+00 : f32
    %8 = vector.broadcast %cst_9 : f32 to vector<2x32xf32>
    %c0_10 = arith.constant 0 : index
    %c0_11 = arith.constant 0 : index
    %9 = vector.load %arg8[%c0_10, %c0_11] : memref<16x32xf32, #tpu.memory_space<vmem>>, vector<2x32xf32>
    %cst_12 = arith.constant dense<0.000000e+00> : vector<2x32xf32>
    %10 = tpu.matmul %8, %7, %cst_12 {dimension_numbers = #tpu.dot_dimension_numbers<[1], [0], [0], [1], [0, 0, 1, 1], [], []>} : vector<2x32xf32>, vector<32x32xf32>, vector<2x32xf32> -> vector<2x32xf32>
    %11 = arith.addf %9, %10 : vector<2x32xf32>
    %cst_13 = arith.constant 0.000000e+00 : f32
    %12 = vector.broadcast %cst_13 : f32 to vector<2x32xf32>
    %13 = arith.maximumf %11, %12 : vector<2x32xf32>
    %c2 = arith.constant 2 : index
    %c0_14 = arith.constant 0 : index
    %14 = vector.load %arg8[%c2, %c0_14] : memref<16x32xf32, #tpu.memory_space<vmem>>, vector<2x32xf32>
    %cst_15 = arith.constant dense<0.000000e+00> : vector<2x32xf32>
    %15 = tpu.matmul %13, %7, %cst_15 {dimension_numbers = #tpu.dot_dimension_numbers<[1], [0], [0], [1], [0, 0, 1, 1], [], []>} : vector<2x32xf32>, vector<32x32xf32>, vector<2x32xf32> -> vector<2x32xf32>
    %16 = arith.addf %14, %15 : vector<2x32xf32>
    %cst_16 = arith.constant 0.000000e+00 : f32
    %17 = vector.broadcast %cst_16 : f32 to vector<2x32xf32>
    %18 = arith.maximumf %16, %17 : vector<2x32xf32>
    %c4 = arith.constant 4 : index
    %c0_17 = arith.constant 0 : index
    %19 = vector.load %arg8[%c4, %c0_17] : memref<16x32xf32, #tpu.memory_space<vmem>>, vector<2x32xf32>
    %cst_18 = arith.constant dense<0.000000e+00> : vector<2x32xf32>
    %20 = tpu.matmul %18, %7, %cst_18 {dimension_numbers = #tpu.dot_dimension_numbers<[1], [0], [0], [1], [0, 0, 1, 1], [], []>} : vector<2x32xf32>, vector<32x32xf32>, vector<2x32xf32> -> vector<2x32xf32>
    %21 = arith.addf %19, %20 : vector<2x32xf32>
    %cst_19 = arith.constant 0.000000e+00 : f32
    %22 = vector.broadcast %cst_19 : f32 to vector<2x32xf32>
    %23 = arith.maximumf %21, %22 : vector<2x32xf32>
    %c6 = arith.constant 6 : index
    %c0_20 = arith.constant 0 : index
    %24 = vector.load %arg8[%c6, %c0_20] : memref<16x32xf32, #tpu.memory_space<vmem>>, vector<2x32xf32>
    %cst_21 = arith.constant dense<0.000000e+00> : vector<2x32xf32>
    %25 = tpu.matmul %23, %7, %cst_21 {dimension_numbers = #tpu.dot_dimension_numbers<[1], [0], [0], [1], [0, 0, 1, 1], [], []>} : vector<2x32xf32>, vector<32x32xf32>, vector<2x32xf32> -> vector<2x32xf32>
    %26 = arith.addf %24, %25 : vector<2x32xf32>
    %cst_22 = arith.constant 0.000000e+00 : f32
    %27 = vector.broadcast %cst_22 : f32 to vector<2x32xf32>
    %28 = arith.maximumf %26, %27 : vector<2x32xf32>
    %c8 = arith.constant 8 : index
    %c0_23 = arith.constant 0 : index
    %29 = vector.load %arg8[%c8, %c0_23] : memref<16x32xf32, #tpu.memory_space<vmem>>, vector<2x32xf32>
    %cst_24 = arith.constant dense<0.000000e+00> : vector<2x32xf32>
    %30 = tpu.matmul %28, %7, %cst_24 {dimension_numbers = #tpu.dot_dimension_numbers<[1], [0], [0], [1], [0, 0, 1, 1], [], []>} : vector<2x32xf32>, vector<32x32xf32>, vector<2x32xf32> -> vector<2x32xf32>
    %31 = arith.addf %29, %30 : vector<2x32xf32>
    %cst_25 = arith.constant 0.000000e+00 : f32
    %32 = vector.broadcast %cst_25 : f32 to vector<2x32xf32>
    %33 = arith.maximumf %31, %32 : vector<2x32xf32>
    %c10 = arith.constant 10 : index
    %c0_26 = arith.constant 0 : index
    %34 = vector.load %arg8[%c10, %c0_26] : memref<16x32xf32, #tpu.memory_space<vmem>>, vector<2x32xf32>
    %cst_27 = arith.constant dense<0.000000e+00> : vector<2x32xf32>
    %35 = tpu.matmul %33, %7, %cst_27 {dimension_numbers = #tpu.dot_dimension_numbers<[1], [0], [0], [1], [0, 0, 1, 1], [], []>} : vector<2x32xf32>, vector<32x32xf32>, vector<2x32xf32> -> vector<2x32xf32>
    %36 = arith.addf %34, %35 : vector<2x32xf32>
    %cst_28 = arith.constant 0.000000e+00 : f32
    %37 = vector.broadcast %cst_28 : f32 to vector<2x32xf32>
    %38 = arith.maximumf %36, %37 : vector<2x32xf32>
    %c12 = arith.constant 12 : index
    %c0_29 = arith.constant 0 : index
    %39 = vector.load %arg8[%c12, %c0_29] : memref<16x32xf32, #tpu.memory_space<vmem>>, vector<2x32xf32>
    %cst_30 = arith.constant dense<0.000000e+00> : vector<2x32xf32>
    %40 = tpu.matmul %38, %7, %cst_30 {dimension_numbers = #tpu.dot_dimension_numbers<[1], [0], [0], [1], [0, 0, 1, 1], [], []>} : vector<2x32xf32>, vector<32x32xf32>, vector<2x32xf32> -> vector<2x32xf32>
    %41 = arith.addf %39, %40 : vector<2x32xf32>
    %cst_31 = arith.constant 0.000000e+00 : f32
    %42 = vector.broadcast %cst_31 : f32 to vector<2x32xf32>
    %43 = arith.maximumf %41, %42 : vector<2x32xf32>
    %c14 = arith.constant 14 : index
    %c0_32 = arith.constant 0 : index
    %44 = vector.load %arg8[%c14, %c0_32] : memref<16x32xf32, #tpu.memory_space<vmem>>, vector<2x32xf32>
    %cst_33 = arith.constant dense<0.000000e+00> : vector<2x32xf32>
    %45 = tpu.matmul %43, %7, %cst_33 {dimension_numbers = #tpu.dot_dimension_numbers<[1], [0], [0], [1], [0, 0, 1, 1], [], []>} : vector<2x32xf32>, vector<32x32xf32>, vector<2x32xf32> -> vector<2x32xf32>
    %46 = arith.addf %44, %45 : vector<2x32xf32>
    %cst_34 = arith.constant 0.000000e+00 : f32
    %47 = vector.broadcast %cst_34 : f32 to vector<2x32xf32>
    %48 = arith.maximumf %46, %47 : vector<2x32xf32>
    %c0_35 = arith.constant 0 : index
    %c0_36 = arith.constant 0 : index
    %49 = vector.load %arg5[%c0_35, %c0_36] : memref<32x128xf32, #tpu.memory_space<vmem>>, vector<32x128xf32>
    %cst_37 = arith.constant dense<0.000000e+00> : vector<2x128xf32>
    %50 = tpu.matmul %48, %49, %cst_37 {dimension_numbers = #tpu.dot_dimension_numbers<[1], [0], [0], [1], [0, 0, 1, 1], [], []>} : vector<2x32xf32>, vector<32x128xf32>, vector<2x128xf32> -> vector<2x128xf32>
    %c0_38 = arith.constant 0 : index
    %c0_39 = arith.constant 0 : index
    %51 = vector.load %arg6[%c0_38, %c0_39] : memref<1x128xf32, #tpu.memory_space<vmem>>, vector<1x128xf32>
    %52 = vector.broadcast %51 : vector<1x128xf32> to vector<2x128xf32>
    %53 = arith.addf %50, %52 : vector<2x128xf32>
    %cst_40 = arith.constant dense<0xFF800000> : vector<2xf32>
    %54 = vector.multi_reduction <maximumf>, %53, %cst_40 [1] : vector<2x128xf32> to vector<2xf32>
    %55 = vector.shape_cast %54 : vector<2xf32> to vector<2x1xf32>
    %56 = vector.broadcast %55 : vector<2x1xf32> to vector<2x128xf32>
    %57 = arith.subf %53, %56 : vector<2x128xf32>
    %58 = math.exp %57 : vector<2x128xf32>
    %cst_41 = arith.constant dense<0.000000e+00> : vector<2xf32>
    %59 = vector.multi_reduction <add>, %58, %cst_41 [1] : vector<2x128xf32> to vector<2xf32>
    %60 = vector.shape_cast %59 : vector<2xf32> to vector<2x1xf32>
    %61 = math.log %60 : vector<2x1xf32>
    %62 = arith.addf %55, %61 : vector<2x1xf32>
    %63 = vector.broadcast %62 : vector<2x1xf32> to vector<2x128xf32>
    %64 = arith.subf %53, %63 : vector<2x128xf32>
    %c0_42 = arith.constant 0 : index
    %c0_43 = arith.constant 0 : index
    %65 = vector.load %arg7[%c0_42, %c0_43] : memref<2x128xf32, #tpu.memory_space<vmem>>, vector<2x128xf32>
    tpu.vector_store %arg7[%c0_42, %c0_43], %64 {strides = array<i32>} : memref<2x128xf32, #tpu.memory_space<vmem>>, vector<2x128xf32>,
    return
  }
  func.func @transform_0(%arg0: i32) -> (i32, i32) {
    %c0_i32 = arith.constant 0 : i32
    %c0_i32_0 = arith.constant 0 : i32
    %c0_i32_1 = arith.constant 0 : i32
    return %c0_i32, %c0_i32_0 : i32, i32
  }
  func.func @transform_1(%arg0: i32) -> (i32, i32) {
    %c0_i32 = arith.constant 0 : i32
    %c0_i32_0 = arith.constant 0 : i32
    %c0_i32_1 = arith.constant 0 : i32
    return %c0_i32, %c0_i32_0 : i32, i32
  }
  func.func @transform_2(%arg0: i32) -> (i32, i32) {
    %c0_i32 = arith.constant 0 : i32
    %c0_i32_0 = arith.constant 0 : i32
    %c0_i32_1 = arith.constant 0 : i32
    return %c0_i32, %c0_i32_0 : i32, i32
  }
  func.func @transform_3(%arg0: i32) -> (i32, i32) {
    %c0_i32 = arith.constant 0 : i32
    %c0_i32_0 = arith.constant 0 : i32
    %c0_i32_1 = arith.constant 0 : i32
    return %c0_i32, %c0_i32_0 : i32, i32
  }
  func.func @transform_4(%arg0: i32) -> (i32, i32) {
    %c0_i32 = arith.constant 0 : i32
    %c0_i32_0 = arith.constant 0 : i32
    %c0_i32_1 = arith.constant 0 : i32
    return %c0_i32, %c0_i32_0 : i32, i32
  }
  func.func @transform_5(%arg0: i32) -> (i32, i32) {
    %c0_i32 = arith.constant 0 : i32
    %c0_i32_0 = arith.constant 0 : i32
    %c0_i32_1 = arith.constant 0 : i32
    return %c0_i32, %c0_i32_0 : i32, i32
  }
  func.func @transform_6(%arg0: i32) -> (i32, i32) {
    %c0_i32 = arith.constant 0 : i32
    %c0_i32_0 = arith.constant 0 : i32
    %c0_i32_1 = arith.constant 0 : i32
    return %c0_i32, %c0_i32_0 : i32, i32
  }
}

</mosaic_0001>

<llo_original>
// kernel: rnn_forward.1
$region0: #{rnn_forward.1}
  #allocation0 [shape = 'u32[]', space=smem, size = 0x4, offset = 0x4, fixed_abs, tag = 'smem constant byte address 0x4 - core index']
  #allocation1 [shape = 'u32[144,128]{1,0:T(1,128)}', space=vmem, size = 0x12000, scoped, tag = 'internal scratch']
  #allocation2 [shape = 'f32[16,32]{1,0:T(8,128)}', space=vmem, size = 0x2000, scoped, tag = 'scratch operand']
  %s0 = inlined_call_operand.hbm [shape: f32[16,16], index: 0, kind: input, shape index: {}]
  %s1 = inlined_call_operand.hbm [shape: f32[16,32], index: 1, kind: input, shape index: {}]
  %s2 = inlined_call_operand.vmem [shape: f32[1,32], index: 2, kind: input, shape index: {}]
  %s3 = inlined_call_operand.hbm [shape: f32[32,32], index: 3, kind: input, shape index: {}]
  %s4 = inlined_call_operand.hbm [shape: f32[32,128], index: 4, kind: input, shape index: {}]
  %s5 = inlined_call_operand.vmem [shape: f32[1,128], index: 5, kind: input, shape index: {}]
  %s6 = inlined_call_operand.hbm [shape: f32[2,128], index: 6, kind: output, shape index: {}]
  %s7 = sld [smem:[#allocation0]]
  $region50: #{rnn_forward.1} parent=0
    _
  %s9 = ssub.s32 1, %s7
  %s10 = scalar_select 0, %s9, %s7
  $region1: #{rnn_forward.1} parent=0
    #allocation3 [shape = 'u8[8192]{0}', space=vmem, size = 0x2000, scoped, tag = 'input window, operand 0, single buffered']
    #allocation4 [shape = 's32[1]{0}', space=sflag, size = 0x4, scoped, tag = 'scoped memory for rnn_forward.1']
    #allocation5 [shape = 's32[1]{0}', space=sflag, size = 0x4, scoped, tag = 'scoped memory for rnn_forward.1']
    #allocation6 [shape = 'u8[8192]{0}', space=vmem, size = 0x2000, scoped, tag = 'input window, operand 1, single buffered']
    #allocation7 [shape = 's32[1]{0}', space=sflag, size = 0x4, scoped, tag = 'scoped memory for rnn_forward.1']
    #allocation8 [shape = 'u8[16384]{0}', space=vmem, size = 0x4000, scoped, tag = 'input window, operand 3, single buffered']
    #allocation9 [shape = 'u8[16384]{0}', space=vmem, size = 0x4000, scoped, tag = 'input window, operand 4, single buffered']
    #allocation10 [shape = 's32[1]{0}', space=sflag, size = 0x4, scoped, tag = 'scoped memory for rnn_forward.1']
    #allocation11 [shape = 'u8[1024]{0}', space=vmem, size = 0x400, scoped, tag = 'output window, operand 0, single buffered']
    %11 = vsyncpa [#allocation4], 0
    %12 = vsyncpa [#allocation7], 0
    %13 = vsyncpa [#allocation10], 0
    %14 = vsyncpa [#allocation5], 0
    // Predicated region
    $region2: #{rnn_forward.1} parent=1 // pred_check
      _
    $region3: #{rnn_forward.1} parent=1 // pred_check_branch
      %16 = sbr.rel (0) target = $region5
    $region4: #{rnn_forward.1} parent=1 // pred_region
      %s18 = ssub.s32 256, 256
      %19 = vsyncadd [#allocation4], %s18
      %s20 = sshll.u32 [#allocation3], 4
      %s21 = int_to_ptr.vmem [resolvable:$true] %s20
      %26 = dma.hbm_to_vmem [thread:$0]  %s0, 256, %s21, [#allocation4], 128, 128, 8
    $region5: #{rnn_forward.1} parent=1 // pred_fallthru
      _
    // Predicated region
    $region6: #{rnn_forward.1} parent=1 // pred_check
      _
    $region7: #{rnn_forward.1} parent=1 // pred_check_branch
      %28 = sbr.rel (0) target = $region9
    $region8: #{rnn_forward.1} parent=1 // pred_region
      %s30 = ssub.s32 256, 256
      %31 = vsyncadd [#allocation7], %s30
      %s32 = sshll.u32 [#allocation6], 4
      %s33 = int_to_ptr.vmem [resolvable:$true] %s32
      %38 = dma.hbm_to_vmem [thread:$0]  %s1, 256, %s33, [#allocation7], 128, 128, 8
    $region9: #{rnn_forward.1} parent=1 // pred_fallthru
      _
    // Predicated region
    $region10: #{rnn_forward.1} parent=1 // pred_check
      _
    $region11: #{rnn_forward.1} parent=1 // pred_check_branch
      %40 = sbr.rel (0) target = $region13
    $region12: #{rnn_forward.1} parent=1 // pred_region
      _
    $region13: #{rnn_forward.1} parent=1 // pred_fallthru
      _
    // Predicated region
    $region14: #{rnn_forward.1} parent=1 // pred_check
      _
    $region15: #{rnn_forward.1} parent=1 // pred_check_branch
      %42 = sbr.rel (0) target = $region17
    $region16: #{rnn_forward.1} parent=1 // pred_region
      %s44 = ssub.s32 512, 512
      %45 = vsyncadd [#allocation7], %s44
      %s46 = sshll.u32 [#allocation8], 4
      %s47 = int_to_ptr.vmem [resolvable:$true] %s46
      %52 = dma.hbm_to_vmem [thread:$0]  %s3, 512, %s47, [#allocation7], 128, 128, 8
    $region17: #{rnn_forward.1} parent=1 // pred_fallthru
      _
    // Predicated region
    $region18: #{rnn_forward.1} parent=1 // pred_check
      _
    $region19: #{rnn_forward.1} parent=1 // pred_check_branch
      %54 = sbr.rel (0) target = $region21
    $region20: #{rnn_forward.1} parent=1 // pred_region
      %s56 = ssub.s32 512, 512
      %57 = vsyncadd [#allocation10], %s56
      %s58 = sshll.u32 [#allocation9], 4
      %s59 = int_to_ptr.vmem [resolvable:$true] %s58
      %64 = dma.hbm_to_vmem [thread:$0]  %s4, 512, %s59, [#allocation10], 128, 128, 8
    $region21: #{rnn_forward.1} parent=1 // pred_fallthru
      _
    // Predicated region
    $region22: #{rnn_forward.1} parent=1 // pred_check
      _
    $region23: #{rnn_forward.1} parent=1 // pred_check_branch
      %66 = sbr.rel (0) target = $region25
    $region24: #{rnn_forward.1} parent=1 // pred_region
      _
    $region25: #{rnn_forward.1} parent=1 // pred_fallthru
      _
    // Predicated region
    $region26: #{rnn_forward.1} parent=1 // pred_check
      _
    $region27: #{rnn_forward.1} parent=1 // pred_check_branch
      %68 = sbr.rel (0) target = $region29
    $region28: #{rnn_forward.1} parent=1 // pred_region
      %69 = dma.done [#allocation4], 256
    $region29: #{rnn_forward.1} parent=1 // pred_fallthru
      _
    // Predicated region
    $region30: #{rnn_forward.1} parent=1 // pred_check
      _
    $region31: #{rnn_forward.1} parent=1 // pred_check_branch
      %71 = sbr.rel (0) target = $region33
    $region32: #{rnn_forward.1} parent=1 // pred_region
      %72 = dma.done [#allocation7], 256
    $region33: #{rnn_forward.1} parent=1 // pred_fallthru
      _
    // Predicated region
    $region34: #{rnn_forward.1} parent=1 // pred_check
      _
    $region35: #{rnn_forward.1} parent=1 // pred_check_branch
      %74 = sbr.rel (0) target = $region37
    $region36: #{rnn_forward.1} parent=1 // pred_region
      %75 = dma.done [#allocation7], 512
    $region37: #{rnn_forward.1} parent=1 // pred_fallthru
      _
    // Predicated region
    $region38: #{rnn_forward.1} parent=1 // pred_check
      _
    $region39: #{rnn_forward.1} parent=1 // pred_check_branch
      %77 = sbr.rel (0) target = $region41
    $region40: #{rnn_forward.1} parent=1 // pred_region
      %78 = dma.done [#allocation10], 512
    $region41: #{rnn_forward.1} parent=1 // pred_fallthru
      _
    %v79 = vld [vmem:[#allocation3] sm:$0xff]
    %v80 = vld [vmem:[#allocation3 + $0x8] sm:$0xff]
    %v81 = vld [vmem:[#allocation6] sm:$0xff]
    %v82 = vld [vmem:[#allocation6 + $0x8] sm:$0xff]
    %v83 = vld [vmem:[%s2] sm:$0x1]
    %v85 = vlaneseq
    %v86 = vshrl.u32 %v85, 7
    %v87 = vsub.s32 0, %v86
    %v88 = vrot.slane %v83, %v87
    %vm90 = vcmask 130048
    %v92 = vsel %vm90, %v79, 0
    %v95 = vsel %vm90, %v80, 0
    %97 = vmatprep.subr.mxu0 0.0
    %98 = vmatpush1.msra.mxu0 %v81
    %99 = vmatprep.subr.mxu0 0.0
    %100 = vmatpush1.msra.mxu0 %v82
    %101 = vmatprep.subr.mxu0 0.0
    %102 = vmatpush1.msra.mxu0 0.0
    %103 = vmatprep.subr.mxu0 0.0
    %104 = vmatpush1.msra.mxu0 0.0
    %105 = vmatprep.subr.mxu0 0.0
    %106 = vmatpush1.msra.mxu0 0.0
    %107 = vmatprep.subr.mxu0 0.0
    %108 = vmatpush1.msra.mxu0 0.0
    %109 = vmatprep.subr.mxu0 0.0
    %110 = vmatpush1.msra.mxu0 0.0
    %111 = vmatprep.subr.mxu0 0.0
    %112 = vmatpush1.msra.mxu0 0.0
    %113 = vmatprep.subr.mxu0 0.0
    %114 = vmatpush1.msra.mxu0 0.0
    %115 = vmatprep.subr.mxu0 0.0
    %116 = vmatpush1.msra.mxu0 0.0
    %117 = vmatprep.subr.mxu0 0.0
    %118 = vmatpush1.msra.mxu0 0.0
    %119 = vmatprep.subr.mxu0 0.0
    %120 = vmatpush1.msra.mxu0 0.0
    %121 = vmatprep.subr.mxu0 0.0
    %122 = vmatpush1.msra.mxu0 0.0
    %123 = vmatprep.subr.mxu0 0.0
    %124 = vmatpush1.msra.mxu0 0.0
    %125 = vmatprep.subr.mxu0 0.0
    %126 = vmatpush1.msra.mxu0 0.0
    %127 = vmatprep.subr.mxu0 0.0
    %128 = vmatpush1.msra.mxu0 0.0
    %129 = vmatprep.subr.mxu0 0.0
    %130 = vmatpush1.msra.mxu0 0.0
    %131 = vmatprep.subr.mxu0 0.0
    %132 = vmatpush1.msra.mxu0 0.0
    %133 = vmatprep.subr.mxu0 0.0
    %134 = vmatpush1.msra.mxu0 0.0
    %135 = vmatprep.subr.mxu0 0.0
    %136 = vmatpush1.msra.mxu0 0.0
    %137 = vmatprep.subr.mxu0 0.0
    %138 = vmatpush1.msra.mxu0 0.0
    %139 = vmatprep.subr.mxu0 0.0
    %140 = vmatpush1.msra.mxu0 0.0
    %141 = vmatprep.subr.mxu0 0.0
    %142 = vmatpush1.msra.mxu0 0.0
    %143 = vmatprep.subr.mxu0 0.0
    %144 = vmatpush1.msra.mxu0 0.0
    %145 = vmatprep.subr.mxu0 0.0
    %146 = vmatpush1.msra.mxu0 0.0
    %147 = vmatprep.subr.mxu0 0.0
    %148 = vmatpush1.msra.mxu0 0.0
    %149 = vmatprep.subr.mxu0 0.0
    %150 = vmatpush1.msra.mxu0 0.0
    %151 = vmatprep.subr.mxu0 0.0
    %152 = vmatpush1.msra.mxu0 0.0
    %153 = vmatprep.subr.mxu0 0.0
    %154 = vmatpush1.msra.mxu0 0.0
    %155 = vmatprep.subr.mxu0 0.0
    %156 = vmatpush1.msra.mxu0 0.0
    %157 = vmatprep.subr.mxu0 0.0
    %158 = vmatpush1.msra.mxu0 0.0
    %159 = vmatprep.subr.mxu0 0.0
    %160 = vmatpush1.msra.mxu0 0.0
    %161 = vmatprep.mubr.f32.mxu0 0.0
    %162 = vmatmul.mubr.f32.gmra.mrb[0].mxu0 %v92
    %v163 = vpop.f32.mrb[0].mxu0
    %v164 = vadd.f32 %v88, %v163
    %v165 = vpop.f32.mrb[0].mxu0
    %166 = vmatprep.mubr.f32.mxu0 0.0
    %167 = vmatmul.mubr.f32.gmra.mrb[0].mxu0 %v95
    %v168 = vpop.f32.mrb[0].mxu0
    %v169 = vadd.f32 %v88, %v168
    %v170 = vpop.f32.mrb[0].mxu0
    %171 = vdwg.mxu0
    %vm172 = vcmask 261120
    %173 = vst.msk [vmem:[#allocation2] sm:$0xff] %vm172, %v164
    %174 = vst.msk [vmem:[#allocation2 + $0x8] sm:$0xff] %vm172, %v169
    %v175 = vld [vmem:[#allocation8] sm:$0xff]
    %v176 = vld [vmem:[#allocation8 + $0x8] sm:$0xff]
    %v177 = vld [vmem:[#allocation8 + $0x10] sm:$0xff]
    %v178 = vld [vmem:[#allocation8 + $0x18] sm:$0xff]
    %v179 = vld [vmem:[#allocation2] sm:$0x3]
    %v181 = vsel %vm172, 0.0, 0
    %183 = vmatprep.subr.mxu0 0.0
    %184 = vmatpush1.msra.mxu0 %v175
    %185 = vmatprep.subr.mxu0 0.0
    %186 = vmatpush1.msra.mxu0 %v176
    %187 = vmatprep.subr.mxu0 0.0
    %188 = vmatpush1.msra.mxu0 %v177
    %189 = vmatprep.subr.mxu0 0.0
    %190 = vmatpush1.msra.mxu0 %v178
    %191 = vmatprep.subr.mxu0 0.0
    %192 = vmatpush1.msra.mxu0 0.0
    %193 = vmatprep.subr.mxu0 0.0
    %194 = vmatpush1.msra.mxu0 0.0
    %195 = vmatprep.subr.mxu0 0.0
    %196 = vmatpush1.msra.mxu0 0.0
    %197 = vmatprep.subr.mxu0 0.0
    %198 = vmatpush1.msra.mxu0 0.0
    %199 = vmatprep.subr.mxu0 0.0
    %200 = vmatpush1.msra.mxu0 0.0
    %201 = vmatprep.subr.mxu0 0.0
    %202 = vmatpush1.msra.mxu0 0.0
    %203 = vmatprep.subr.mxu0 0.0
    %204 = vmatpush1.msra.mxu0 0.0
    %205 = vmatprep.subr.mxu0 0.0
    %206 = vmatpush1.msra.mxu0 0.0
    %207 = vmatprep.subr.mxu0 0.0
    %208 = vmatpush1.msra.mxu0 0.0
    %209 = vmatprep.subr.mxu0 0.0
    %210 = vmatpush1.msra.mxu0 0.0
    %211 = vmatprep.subr.mxu0 0.0
    %212 = vmatpush1.msra.mxu0 0.0
    %213 = vmatprep.subr.mxu0 0.0
    %214 = vmatpush1.msra.mxu0 0.0
    %215 = vmatprep.subr.mxu0 0.0
    %216 = vmatpush1.msra.mxu0 0.0
    %217 = vmatprep.subr.mxu0 0.0
    %218 = vmatpush1.msra.mxu0 0.0
    %219 = vmatprep.subr.mxu0 0.0
    %220 = vmatpush1.msra.mxu0 0.0
    %221 = vmatprep.subr.mxu0 0.0
    %222 = vmatpush1.msra.mxu0 0.0
    %223 = vmatprep.subr.mxu0 0.0
    %224 = vmatpush1.msra.mxu0 0.0
    %225 = vmatprep.subr.mxu0 0.0
    %226 = vmatpush1.msra.mxu0 0.0
    %227 = vmatprep.subr.mxu0 0.0
    %228 = vmatpush1.msra.mxu0 0.0
    %229 = vmatprep.subr.mxu0 0.0
    %230 = vmatpush1.msra.mxu0 0.0
    %231 = vmatprep.subr.mxu0 0.0
    %232 = vmatpush1.msra.mxu0 0.0
    %233 = vmatprep.subr.mxu0 0.0
    %234 = vmatpush1.msra.mxu0 0.0
    %235 = vmatprep.subr.mxu0 0.0
    %236 = vmatpush1.msra.mxu0 0.0
    %237 = vmatprep.subr.mxu0 0.0
    %238 = vmatpush1.msra.mxu0 0.0
    %239 = vmatprep.subr.mxu0 0.0
    %240 = vmatpush1.msra.mxu0 0.0
    %241 = vmatprep.subr.mxu0 0.0
    %242 = vmatpush1.msra.mxu0 0.0
    %243 = vmatprep.subr.mxu0 0.0
    %244 = vmatpush1.msra.mxu0 0.0
    %245 = vmatprep.subr.mxu0 0.0
    %246 = vmatpush1.msra.mxu0 0.0
    %247 = vmatprep.mubr.f32.mxu0 0.0
    %248 = vmatmul.mubr.f32.gmra.mrb[0].mxu0 %v181
    %v249 = vpop.f32.mrb[0].mxu0
    %v250 = vadd.f32 0.0, %v249
    %v251 = vpop.f32.mrb[0].mxu0
    %252 = vdwg.mxu0
    %v253 = vadd.f32 %v179, %v250
    %v254 = vmax.f32 %v253, 0.0
    %v255 = vld [vmem:[#allocation2 + $0x2] sm:$0x3]
    %v257 = vsel %vm172, %v254, 0
    %259 = vmatprep.subr.mxu0 0.0
    %260 = vmatpush1.msra.mxu0 %v175
    %261 = vmatprep.subr.mxu0 0.0
    %262 = vmatpush1.msra.mxu0 %v176
    %263 = vmatprep.subr.mxu0 0.0
    %264 = vmatpush1.msra.mxu0 %v177
    %265 = vmatprep.subr.mxu0 0.0
    %266 = vmatpush1.msra.mxu0 %v178
    %267 = vmatprep.subr.mxu0 0.0
    %268 = vmatpush1.msra.mxu0 0.0
    %269 = vmatprep.subr.mxu0 0.0
    %270 = vmatpush1.msra.mxu0 0.0
    %271 = vmatprep.subr.mxu0 0.0
    %272 = vmatpush1.msra.mxu0 0.0
    %273 = vmatprep.subr.mxu0 0.0
    %274 = vmatpush1.msra.mxu0 0.0
    %275 = vmatprep.subr.mxu0 0.0
    %276 = vmatpush1.msra.mxu0 0.0
    %277 = vmatprep.subr.mxu0 0.0
    %278 = vmatpush1.msra.mxu0 0.0
    %279 = vmatprep.subr.mxu0 0.0
    %280 = vmatpush1.msra.mxu0 0.0
    %281 = vmatprep.subr.mxu0 0.0
    %282 = vmatpush1.msra.mxu0 0.0
    %283 = vmatprep.subr.mxu0 0.0
    %284 = vmatpush1.msra.mxu0 0.0
    %285 = vmatprep.subr.mxu0 0.0
    %286 = vmatpush1.msra.mxu0 0.0
    %287 = vmatprep.subr.mxu0 0.0
    %288 = vmatpush1.msra.mxu0 0.0
    %289 = vmatprep.subr.mxu0 0.0
    %290 = vmatpush1.msra.mxu0 0.0
    %291 = vmatprep.subr.mxu0 0.0
    %292 = vmatpush1.msra.mxu0 0.0
    %293 = vmatprep.subr.mxu0 0.0
    %294 = vmatpush1.msra.mxu0 0.0
    %295 = vmatprep.subr.mxu0 0.0
    %296 = vmatpush1.msra.mxu0 0.0
    %297 = vmatprep.subr.mxu0 0.0
    %298 = vmatpush1.msra.mxu0 0.0
    %299 = vmatprep.subr.mxu0 0.0
    %300 = vmatpush1.msra.mxu0 0.0
    %301 = vmatprep.subr.mxu0 0.0
    %302 = vmatpush1.msra.mxu0 0.0
    %303 = vmatprep.subr.mxu0 0.0
    %304 = vmatpush1.msra.mxu0 0.0
    %305 = vmatprep.subr.mxu0 0.0
    %306 = vmatpush1.msra.mxu0 0.0
    %307 = vmatprep.subr.mxu0 0.0
    %308 = vmatpush1.msra.mxu0 0.0
    %309 = vmatprep.subr.mxu0 0.0
    %310 = vmatpush1.msra.mxu0 0.0
    %311 = vmatprep.subr.mxu0 0.0
    %312 = vmatpush1.msra.mxu0 0.0
    %313 = vmatprep.subr.mxu0 0.0
    %314 = vmatpush1.msra.mxu0 0.0
    %315 = vmatprep.subr.mxu0 0.0
    %316 = vmatpush1.msra.mxu0 0.0
    %317 = vmatprep.subr.mxu0 0.0
    %318 = vmatpush1.msra.mxu0 0.0
    %319 = vmatprep.subr.mxu0 0.0
    %320 = vmatpush1.msra.mxu0 0.0
    %321 = vmatprep.subr.mxu0 0.0
    %322 = vmatpush1.msra.mxu0 0.0
    %323 = vmatprep.mubr.f32.mxu0 0.0
    %324 = vmatmul.mubr.f32.gmra.mrb[0].mxu0 %v257
    %v325 = vpop.f32.mrb[0].mxu0
    %v326 = vadd.f32 0.0, %v325
    %v327 = vpop.f32.mrb[0].mxu0
    %328 = vdwg.mxu0
    %v329 = vadd.f32 %v255, %v326
    %v330 = vmax.f32 %v329, 0.0
    %v331 = vld [vmem:[#allocation2 + $0x4] sm:$0x3]
    %v333 = vsel %vm172, %v330, 0
    %335 = vmatprep.subr.mxu0 0.0
    %336 = vmatpush1.msra.mxu0 %v175
    %337 = vmatprep.subr.mxu0 0.0
    %338 = vmatpush1.msra.mxu0 %v176
    %339 = vmatprep.subr.mxu0 0.0
    %340 = vmatpush1.msra.mxu0 %v177
    %341 = vmatprep.subr.mxu0 0.0
    %342 = vmatpush1.msra.mxu0 %v178
    %343 = vmatprep.subr.mxu0 0.0
    %344 = vmatpush1.msra.mxu0 0.0
    %345 = vmatprep.subr.mxu0 0.0
    %346 = vmatpush1.msra.mxu0 0.0
    %347 = vmatprep.subr.mxu0 0.0
    %348 = vmatpush1.msra.mxu0 0.0
    %349 = vmatprep.subr.mxu0 0.0
    %350 = vmatpush1.msra.mxu0 0.0
    %351 = vmatprep.subr.mxu0 0.0
    %352 = vmatpush1.msra.mxu0 0.0
    %353 = vmatprep.subr.mxu0 0.0
    %354 = vmatpush1.msra.mxu0 0.0
    %355 = vmatprep.subr.mxu0 0.0
    %356 = vmatpush1.msra.mxu0 0.0
    %357 = vmatprep.subr.mxu0 0.0
    %358 = vmatpush1.msra.mxu0 0.0
    %359 = vmatprep.subr.mxu0 0.0
    %360 = vmatpush1.msra.mxu0 0.0
    %361 = vmatprep.subr.mxu0 0.0
    %362 = vmatpush1.msra.mxu0 0.0
    %363 = vmatprep.subr.mxu0 0.0
    %364 = vmatpush1.msra.mxu0 0.0
    %365 = vmatprep.subr.mxu0 0.0
    %366 = vmatpush1.msra.mxu0 0.0
    %367 = vmatprep.subr.mxu0 0.0
    %368 = vmatpush1.msra.mxu0 0.0
    %369 = vmatprep.subr.mxu0 0.0
    %370 = vmatpush1.msra.mxu0 0.0
    %371 = vmatprep.subr.mxu0 0.0
    %372 = vmatpush1.msra.mxu0 0.0
    %373 = vmatprep.subr.mxu0 0.0
    %374 = vmatpush1.msra.mxu0 0.0
    %375 = vmatprep.subr.mxu0 0.0
    %376 = vmatpush1.msra.mxu0 0.0
    %377 = vmatprep.subr.mxu0 0.0
    %378 = vmatpush1.msra.mxu0 0.0
    %379 = vmatprep.subr.mxu0 0.0
    %380 = vmatpush1.msra.mxu0 0.0
    %381 = vmatprep.subr.mxu0 0.0
    %382 = vmatpush1.msra.mxu0 0.0
    %383 = vmatprep.subr.mxu0 0.0
    %384 = vmatpush1.msra.mxu0 0.0
    %385 = vmatprep.subr.mxu0 0.0
    %386 = vmatpush1.msra.mxu0 0.0
    %387 = vmatprep.subr.mxu0 0.0
    %388 = vmatpush1.msra.mxu0 0.0
    %389 = vmatprep.subr.mxu0 0.0
    %390 = vmatpush1.msra.mxu0 0.0
    %391 = vmatprep.subr.mxu0 0.0
    %392 = vmatpush1.msra.mxu0 0.0
    %393 = vmatprep.subr.mxu0 0.0
    %394 = vmatpush1.msra.mxu0 0.0
    %395 = vmatprep.subr.mxu0 0.0
    %396 = vmatpush1.msra.mxu0 0.0
    %397 = vmatprep.subr.mxu0 0.0
    %398 = vmatpush1.msra.mxu0 0.0
    %399 = vmatprep.mubr.f32.mxu0 0.0
    %400 = vmatmul.mubr.f32.gmra.mrb[0].mxu0 %v333
    %v401 = vpop.f32.mrb[0].mxu0
    %v402 = vadd.f32 0.0, %v401
    %v403 = vpop.f32.mrb[0].mxu0
    %404 = vdwg.mxu0
    %v405 = vadd.f32 %v331, %v402
    %v406 = vmax.f32 %v405, 0.0
    %v407 = vld [vmem:[#allocation2 + $0x6] sm:$0x3]
    %v409 = vsel %vm172, %v406, 0
    %411 = vmatprep.subr.mxu0 0.0
    %412 = vmatpush1.msra.mxu0 %v175
    %413 = vmatprep.subr.mxu0 0.0
    %414 = vmatpush1.msra.mxu0 %v176
    %415 = vmatprep.subr.mxu0 0.0
    %416 = vmatpush1.msra.mxu0 %v177
    %417 = vmatprep.subr.mxu0 0.0
    %418 = vmatpush1.msra.mxu0 %v178
    %419 = vmatprep.subr.mxu0 0.0
    %420 = vmatpush1.msra.mxu0 0.0
    %421 = vmatprep.subr.mxu0 0.0
    %422 = vmatpush1.msra.mxu0 0.0
    %423 = vmatprep.subr.mxu0 0.0
    %424 = vmatpush1.msra.mxu0 0.0
    %425 = vmatprep.subr.mxu0 0.0
    %426 = vmatpush1.msra.mxu0 0.0
    %427 = vmatprep.subr.mxu0 0.0
    %428 = vmatpush1.msra.mxu0 0.0
    %429 = vmatprep.subr.mxu0 0.0
    %430 = vmatpush1.msra.mxu0 0.0
    %431 = vmatprep.subr.mxu0 0.0
    %432 = vmatpush1.msra.mxu0 0.0
    %433 = vmatprep.subr.mxu0 0.0
    %434 = vmatpush1.msra.mxu0 0.0
    %435 = vmatprep.subr.mxu0 0.0
    %436 = vmatpush1.msra.mxu0 0.0
    %437 = vmatprep.subr.mxu0 0.0
    %438 = vmatpush1.msra.mxu0 0.0
    %439 = vmatprep.subr.mxu0 0.0
    %440 = vmatpush1.msra.mxu0 0.0
    %441 = vmatprep.subr.mxu0 0.0
    %442 = vmatpush1.msra.mxu0 0.0
    %443 = vmatprep.subr.mxu0 0.0
    %444 = vmatpush1.msra.mxu0 0.0
    %445 = vmatprep.subr.mxu0 0.0
    %446 = vmatpush1.msra.mxu0 0.0
    %447 = vmatprep.subr.mxu0 0.0
    %448 = vmatpush1.msra.mxu0 0.0
    %449 = vmatprep.subr.mxu0 0.0
    %450 = vmatpush1.msra.mxu0 0.0
    %451 = vmatprep.subr.mxu0 0.0
    %452 = vmatpush1.msra.mxu0 0.0
    %453 = vmatprep.subr.mxu0 0.0
    %454 = vmatpush1.msra.mxu0 0.0
    %455 = vmatprep.subr.mxu0 0.0
    %456 = vmatpush1.msra.mxu0 0.0
    %457 = vmatprep.subr.mxu0 0.0
    %458 = vmatpush1.msra.mxu0 0.0
    %459 = vmatprep.subr.mxu0 0.0
    %460 = vmatpush1.msra.mxu0 0.0
    %461 = vmatprep.subr.mxu0 0.0
    %462 = vmatpush1.msra.mxu0 0.0
    %463 = vmatprep.subr.mxu0 0.0
    %464 = vmatpush1.msra.mxu0 0.0
    %465 = vmatprep.subr.mxu0 0.0
    %466 = vmatpush1.msra.mxu0 0.0
    %467 = vmatprep.subr.mxu0 0.0
    %468 = vmatpush1.msra.mxu0 0.0
    %469 = vmatprep.subr.mxu0 0.0
    %470 = vmatpush1.msra.mxu0 0.0
    %471 = vmatprep.subr.mxu0 0.0
    %472 = vmatpush1.msra.mxu0 0.0
    %473 = vmatprep.subr.mxu0 0.0
    %474 = vmatpush1.msra.mxu0 0.0
    %475 = vmatprep.mubr.f32.mxu0 0.0
    %476 = vmatmul.mubr.f32.gmra.mrb[0].mxu0 %v409
    %v477 = vpop.f32.mrb[0].mxu0
    %v478 = vadd.f32 0.0, %v477
    %v479 = vpop.f32.mrb[0].mxu0
    %480 = vdwg.mxu0
    %v481 = vadd.f32 %v407, %v478
    %v482 = vmax.f32 %v481, 0.0
    %v483 = vld [vmem:[#allocation2 + $0x8] sm:$0x3]
    %v485 = vsel %vm172, %v482, 0
    %487 = vmatprep.subr.mxu0 0.0
    %488 = vmatpush1.msra.mxu0 %v175
    %489 = vmatprep.subr.mxu0 0.0
    %490 = vmatpush1.msra.mxu0 %v176
    %491 = vmatprep.subr.mxu0 0.0
    %492 = vmatpush1.msra.mxu0 %v177
    %493 = vmatprep.subr.mxu0 0.0
    %494 = vmatpush1.msra.mxu0 %v178
    %495 = vmatprep.subr.mxu0 0.0
    %496 = vmatpush1.msra.mxu0 0.0
    %497 = vmatprep.subr.mxu0 0.0
    %498 = vmatpush1.msra.mxu0 0.0
    %499 = vmatprep.subr.mxu0 0.0
    %500 = vmatpush1.msra.mxu0 0.0
    %501 = vmatprep.subr.mxu0 0.0
    %502 = vmatpush1.msra.mxu0 0.0
    %503 = vmatprep.subr.mxu0 0.0
    %504 = vmatpush1.msra.mxu0 0.0
    %505 = vmatprep.subr.mxu0 0.0
    %506 = vmatpush1.msra.mxu0 0.0
    %507 = vmatprep.subr.mxu0 0.0
    %508 = vmatpush1.msra.mxu0 0.0
    %509 = vmatprep.subr.mxu0 0.0
    %510 = vmatpush1.msra.mxu0 0.0
    %511 = vmatprep.subr.mxu0 0.0
    %512 = vmatpush1.msra.mxu0 0.0
    %513 = vmatprep.subr.mxu0 0.0
    %514 = vmatpush1.msra.mxu0 0.0
    %515 = vmatprep.subr.mxu0 0.0
    %516 = vmatpush1.msra.mxu0 0.0
    %517 = vmatprep.subr.mxu0 0.0
    %518 = vmatpush1.msra.mxu0 0.0
    %519 = vmatprep.subr.mxu0 0.0
    %520 = vmatpush1.msra.mxu0 0.0
    %521 = vmatprep.subr.mxu0 0.0
    %522 = vmatpush1.msra.mxu0 0.0
    %523 = vmatprep.subr.mxu0 0.0
    %524 = vmatpush1.msra.mxu0 0.0
    %525 = vmatprep.subr.mxu0 0.0
    %526 = vmatpush1.msra.mxu0 0.0
    %527 = vmatprep.subr.mxu0 0.0
    %528 = vmatpush1.msra.mxu0 0.0
    %529 = vmatprep.subr.mxu0 0.0
    %530 = vmatpush1.msra.mxu0 0.0
    %531 = vmatprep.subr.mxu0 0.0
    %532 = vmatpush1.msra.mxu0 0.0
    %533 = vmatprep.subr.mxu0 0.0
    %534 = vmatpush1.msra.mxu0 0.0
    %535 = vmatprep.subr.mxu0 0.0
    %536 = vmatpush1.msra.mxu0 0.0
    %537 = vmatprep.subr.mxu0 0.0
    %538 = vmatpush1.msra.mxu0 0.0
    %539 = vmatprep.subr.mxu0 0.0
    %540 = vmatpush1.msra.mxu0 0.0
    %541 = vmatprep.subr.mxu0 0.0
    %542 = vmatpush1.msra.mxu0 0.0
    %543 = vmatprep.subr.mxu0 0.0
    %544 = vmatpush1.msra.mxu0 0.0
    %545 = vmatprep.subr.mxu0 0.0
    %546 = vmatpush1.msra.mxu0 0.0
    %547 = vmatprep.subr.mxu0 0.0
    %548 = vmatpush1.msra.mxu0 0.0
    %549 = vmatprep.subr.mxu0 0.0
    %550 = vmatpush1.msra.mxu0 0.0
    %551 = vmatprep.mubr.f32.mxu0 0.0
    %552 = vmatmul.mubr.f32.gmra.mrb[0].mxu0 %v485
    %v553 = vpop.f32.mrb[0].mxu0
    %v554 = vadd.f32 0.0, %v553
    %v555 = vpop.f32.mrb[0].mxu0
    %556 = vdwg.mxu0
    %v557 = vadd.f32 %v483, %v554
    %v558 = vmax.f32 %v557, 0.0
    %v559 = vld [vmem:[#allocation2 + $0xa] sm:$0x3]
    %v561 = vsel %vm172, %v558, 0
    %563 = vmatprep.subr.mxu0 0.0
    %564 = vmatpush1.msra.mxu0 %v175
    %565 = vmatprep.subr.mxu0 0.0
    %566 = vmatpush1.msra.mxu0 %v176
    %567 = vmatprep.subr.mxu0 0.0
    %568 = vmatpush1.msra.mxu0 %v177
    %569 = vmatprep.subr.mxu0 0.0
    %570 = vmatpush1.msra.mxu0 %v178
    %571 = vmatprep.subr.mxu0 0.0
    %572 = vmatpush1.msra.mxu0 0.0
    %573 = vmatprep.subr.mxu0 0.0
    %574 = vmatpush1.msra.mxu0 0.0
    %575 = vmatprep.subr.mxu0 0.0
    %576 = vmatpush1.msra.mxu0 0.0
    %577 = vmatprep.subr.mxu0 0.0
    %578 = vmatpush1.msra.mxu0 0.0
    %579 = vmatprep.subr.mxu0 0.0
    %580 = vmatpush1.msra.mxu0 0.0
    %581 = vmatprep.subr.mxu0 0.0
    %582 = vmatpush1.msra.mxu0 0.0
    %583 = vmatprep.subr.mxu0 0.0
    %584 = vmatpush1.msra.mxu0 0.0
    %585 = vmatprep.subr.mxu0 0.0
    %586 = vmatpush1.msra.mxu0 0.0
    %587 = vmatprep.subr.mxu0 0.0
    %588 = vmatpush1.msra.mxu0 0.0
    %589 = vmatprep.subr.mxu0 0.0
    %590 = vmatpush1.msra.mxu0 0.0
    %591 = vmatprep.subr.mxu0 0.0
    %592 = vmatpush1.msra.mxu0 0.0
    %593 = vmatprep.subr.mxu0 0.0
    %594 = vmatpush1.msra.mxu0 0.0
    %595 = vmatprep.subr.mxu0 0.0
    %596 = vmatpush1.msra.mxu0 0.0
    %597 = vmatprep.subr.mxu0 0.0
    %598 = vmatpush1.msra.mxu0 0.0
    %599 = vmatprep.subr.mxu0 0.0
    %600 = vmatpush1.msra.mxu0 0.0
    %601 = vmatprep.subr.mxu0 0.0
    %602 = vmatpush1.msra.mxu0 0.0
    %603 = vmatprep.subr.mxu0 0.0
    %604 = vmatpush1.msra.mxu0 0.0
    %605 = vmatprep.subr.mxu0 0.0
    %606 = vmatpush1.msra.mxu0 0.0
    %607 = vmatprep.subr.mxu0 0.0
    %608 = vmatpush1.msra.mxu0 0.0
    %609 = vmatprep.subr.mxu0 0.0
    %610 = vmatpush1.msra.mxu0 0.0
    %611 = vmatprep.subr.mxu0 0.0
    %612 = vmatpush1.msra.mxu0 0.0
    %613 = vmatprep.subr.mxu0 0.0
    %614 = vmatpush1.msra.mxu0 0.0
    %615 = vmatprep.subr.mxu0 0.0
    %616 = vmatpush1.msra.mxu0 0.0
    %617 = vmatprep.subr.mxu0 0.0
    %618 = vmatpush1.msra.mxu0 0.0
    %619 = vmatprep.subr.mxu0 0.0
    %620 = vmatpush1.msra.mxu0 0.0
    %621 = vmatprep.subr.mxu0 0.0
    %622 = vmatpush1.msra.mxu0 0.0
    %623 = vmatprep.subr.mxu0 0.0
    %624 = vmatpush1.msra.mxu0 0.0
    %625 = vmatprep.subr.mxu0 0.0
    %626 = vmatpush1.msra.mxu0 0.0
    %627 = vmatprep.mubr.f32.mxu0 0.0
    %628 = vmatmul.mubr.f32.gmra.mrb[0].mxu0 %v561
    %v629 = vpop.f32.mrb[0].mxu0
    %v630 = vadd.f32 0.0, %v629
    %v631 = vpop.f32.mrb[0].mxu0
    %632 = vdwg.mxu0
    %v633 = vadd.f32 %v559, %v630
    %v634 = vmax.f32 %v633, 0.0
    %v635 = vld [vmem:[#allocation2 + $0xc] sm:$0x3]
    %v637 = vsel %vm172, %v634, 0
    %639 = vmatprep.subr.mxu0 0.0
    %640 = vmatpush1.msra.mxu0 %v175
    %641 = vmatprep.subr.mxu0 0.0
    %642 = vmatpush1.msra.mxu0 %v176
    %643 = vmatprep.subr.mxu0 0.0
    %644 = vmatpush1.msra.mxu0 %v177
    %645 = vmatprep.subr.mxu0 0.0
    %646 = vmatpush1.msra.mxu0 %v178
    %647 = vmatprep.subr.mxu0 0.0
    %648 = vmatpush1.msra.mxu0 0.0
    %649 = vmatprep.subr.mxu0 0.0
    %650 = vmatpush1.msra.mxu0 0.0
    %651 = vmatprep.subr.mxu0 0.0
    %652 = vmatpush1.msra.mxu0 0.0
    %653 = vmatprep.subr.mxu0 0.0
    %654 = vmatpush1.msra.mxu0 0.0
    %655 = vmatprep.subr.mxu0 0.0
    %656 = vmatpush1.msra.mxu0 0.0
    %657 = vmatprep.subr.mxu0 0.0
    %658 = vmatpush1.msra.mxu0 0.0
    %659 = vmatprep.subr.mxu0 0.0
    %660 = vmatpush1.msra.mxu0 0.0
    %661 = vmatprep.subr.mxu0 0.0
    %662 = vmatpush1.msra.mxu0 0.0
    %663 = vmatprep.subr.mxu0 0.0
    %664 = vmatpush1.msra.mxu0 0.0
    %665 = vmatprep.subr.mxu0 0.0
    %666 = vmatpush1.msra.mxu0 0.0
    %667 = vmatprep.subr.mxu0 0.0
    %668 = vmatpush1.msra.mxu0 0.0
    %669 = vmatprep.subr.mxu0 0.0
    %670 = vmatpush1.msra.mxu0 0.0
    %671 = vmatprep.subr.mxu0 0.0
    %672 = vmatpush1.msra.mxu0 0.0
    %673 = vmatprep.subr.mxu0 0.0
    %674 = vmatpush1.msra.mxu0 0.0
    %675 = vmatprep.subr.mxu0 0.0
    %676 = vmatpush1.msra.mxu0 0.0
    %677 = vmatprep.subr.mxu0 0.0
    %678 = vmatpush1.msra.mxu0 0.0
    %679 = vmatprep.subr.mxu0 0.0
    %680 = vmatpush1.msra.mxu0 0.0
    %681 = vmatprep.subr.mxu0 0.0
    %682 = vmatpush1.msra.mxu0 0.0
    %683 = vmatprep.subr.mxu0 0.0
    %684 = vmatpush1.msra.mxu0 0.0
    %685 = vmatprep.subr.mxu0 0.0
    %686 = vmatpush1.msra.mxu0 0.0
    %687 = vmatprep.subr.mxu0 0.0
    %688 = vmatpush1.msra.mxu0 0.0
    %689 = vmatprep.subr.mxu0 0.0
    %690 = vmatpush1.msra.mxu0 0.0
    %691 = vmatprep.subr.mxu0 0.0
    %692 = vmatpush1.msra.mxu0 0.0
    %693 = vmatprep.subr.mxu0 0.0
    %694 = vmatpush1.msra.mxu0 0.0
    %695 = vmatprep.subr.mxu0 0.0
    %696 = vmatpush1.msra.mxu0 0.0
    %697 = vmatprep.subr.mxu0 0.0
    %698 = vmatpush1.msra.mxu0 0.0
    %699 = vmatprep.subr.mxu0 0.0
    %700 = vmatpush1.msra.mxu0 0.0
    %701 = vmatprep.subr.mxu0 0.0
    %702 = vmatpush1.msra.mxu0 0.0
    %703 = vmatprep.mubr.f32.mxu0 0.0
    %704 = vmatmul.mubr.f32.gmra.mrb[0].mxu0 %v637
    %v705 = vpop.f32.mrb[0].mxu0
    %v706 = vadd.f32 0.0, %v705
    %v707 = vpop.f32.mrb[0].mxu0
    %708 = vdwg.mxu0
    %v709 = vadd.f32 %v635, %v706
    %v710 = vmax.f32 %v709, 0.0
    %v711 = vld [vmem:[#allocation2 + $0xe] sm:$0x3]
    %v713 = vsel %vm172, %v710, 0
    %715 = vmatprep.subr.mxu0 0.0
    %716 = vmatpush1.msra.mxu0 %v175
    %717 = vmatprep.subr.mxu0 0.0
    %718 = vmatpush1.msra.mxu0 %v176
    %719 = vmatprep.subr.mxu0 0.0
    %720 = vmatpush1.msra.mxu0 %v177
    %721 = vmatprep.subr.mxu0 0.0
    %722 = vmatpush1.msra.mxu0 %v178
    %723 = vmatprep.subr.mxu0 0.0
    %724 = vmatpush1.msra.mxu0 0.0
    %725 = vmatprep.subr.mxu0 0.0
    %726 = vmatpush1.msra.mxu0 0.0
    %727 = vmatprep.subr.mxu0 0.0
    %728 = vmatpush1.msra.mxu0 0.0
    %729 = vmatprep.subr.mxu0 0.0
    %730 = vmatpush1.msra.mxu0 0.0
    %731 = vmatprep.subr.mxu0 0.0
    %732 = vmatpush1.msra.mxu0 0.0
    %733 = vmatprep.subr.mxu0 0.0
    %734 = vmatpush1.msra.mxu0 0.0
    %735 = vmatprep.subr.mxu0 0.0
    %736 = vmatpush1.msra.mxu0 0.0
    %737 = vmatprep.subr.mxu0 0.0
    %738 = vmatpush1.msra.mxu0 0.0
    %739 = vmatprep.subr.mxu0 0.0
    %740 = vmatpush1.msra.mxu0 0.0
    %741 = vmatprep.subr.mxu0 0.0
    %742 = vmatpush1.msra.mxu0 0.0
    %743 = vmatprep.subr.mxu0 0.0
    %744 = vmatpush1.msra.mxu0 0.0
    %745 = vmatprep.subr.mxu0 0.0
    %746 = vmatpush1.msra.mxu0 0.0
    %747 = vmatprep.subr.mxu0 0.0
    %748 = vmatpush1.msra.mxu0 0.0
    %749 = vmatprep.subr.mxu0 0.0
    %750 = vmatpush1.msra.mxu0 0.0
    %751 = vmatprep.subr.mxu0 0.0
    %752 = vmatpush1.msra.mxu0 0.0
    %753 = vmatprep.subr.mxu0 0.0
    %754 = vmatpush1.msra.mxu0 0.0
    %755 = vmatprep.subr.mxu0 0.0
    %756 = vmatpush1.msra.mxu0 0.0
    %757 = vmatprep.subr.mxu0 0.0
    %758 = vmatpush1.msra.mxu0 0.0
    %759 = vmatprep.subr.mxu0 0.0
    %760 = vmatpush1.msra.mxu0 0.0
    %761 = vmatprep.subr.mxu0 0.0
    %762 = vmatpush1.msra.mxu0 0.0
    %763 = vmatprep.subr.mxu0 0.0
    %764 = vmatpush1.msra.mxu0 0.0
    %765 = vmatprep.subr.mxu0 0.0
    %766 = vmatpush1.msra.mxu0 0.0
    %767 = vmatprep.subr.mxu0 0.0
    %768 = vmatpush1.msra.mxu0 0.0
    %769 = vmatprep.subr.mxu0 0.0
    %770 = vmatpush1.msra.mxu0 0.0
    %771 = vmatprep.subr.mxu0 0.0
    %772 = vmatpush1.msra.mxu0 0.0
    %773 = vmatprep.subr.mxu0 0.0
    %774 = vmatpush1.msra.mxu0 0.0
    %775 = vmatprep.subr.mxu0 0.0
    %776 = vmatpush1.msra.mxu0 0.0
    %777 = vmatprep.subr.mxu0 0.0
    %778 = vmatpush1.msra.mxu0 0.0
    %779 = vmatprep.mubr.f32.mxu0 0.0
    %780 = vmatmul.mubr.f32.gmra.mrb[0].mxu0 %v713
    %v781 = vpop.f32.mrb[0].mxu0
    %v782 = vadd.f32 0.0, %v781
    %v783 = vpop.f32.mrb[0].mxu0
    %784 = vdwg.mxu0
    %v785 = vadd.f32 %v711, %v782
    %v786 = vmax.f32 %v785, 0.0
    %v787 = vld [vmem:[#allocation9] sm:$0xff]
    %v788 = vld [vmem:[#allocation9 + $0x8] sm:$0xff]
    %v789 = vld [vmem:[#allocation9 + $0x10] sm:$0xff]
    %v790 = vld [vmem:[#allocation9 + $0x18] sm:$0xff]
    %v791 = vld [vmem:[%s5] sm:$0x1]
    %v793 = vlaneseq
    %v794 = vshrl.u32 %v793, 7
    %v795 = vsub.s32 0, %v794
    %v796 = vrot.slane %v791, %v795
    %v799 = vsel %vm172, %v786, 0
    %801 = vmatprep.subr.mxu0 0.0
    %802 = vmatpush1.msra.mxu0 %v787
    %803 = vmatprep.subr.mxu0 0.0
    %804 = vmatpush1.msra.mxu0 %v788
    %805 = vmatprep.subr.mxu0 0.0
    %806 = vmatpush1.msra.mxu0 %v789
    %807 = vmatprep.subr.mxu0 0.0
    %808 = vmatpush1.msra.mxu0 %v790
    %809 = vmatprep.subr.mxu0 0.0
    %810 = vmatpush1.msra.mxu0 0.0
    %811 = vmatprep.subr.mxu0 0.0
    %812 = vmatpush1.msra.mxu0 0.0
    %813 = vmatprep.subr.mxu0 0.0
    %814 = vmatpush1.msra.mxu0 0.0
    %815 = vmatprep.subr.mxu0 0.0
    %816 = vmatpush1.msra.mxu0 0.0
    %817 = vmatprep.subr.mxu0 0.0
    %818 = vmatpush1.msra.mxu0 0.0
    %819 = vmatprep.subr.mxu0 0.0
    %820 = vmatpush1.msra.mxu0 0.0
    %821 = vmatprep.subr.mxu0 0.0
    %822 = vmatpush1.msra.mxu0 0.0
    %823 = vmatprep.subr.mxu0 0.0
    %824 = vmatpush1.msra.mxu0 0.0
    %825 = vmatprep.subr.mxu0 0.0
    %826 = vmatpush1.msra.mxu0 0.0
    %827 = vmatprep.subr.mxu0 0.0
    %828 = vmatpush1.msra.mxu0 0.0
    %829 = vmatprep.subr.mxu0 0.0
    %830 = vmatpush1.msra.mxu0 0.0
    %831 = vmatprep.subr.mxu0 0.0
    %832 = vmatpush1.msra.mxu0 0.0
    %833 = vmatprep.subr.mxu0 0.0
    %834 = vmatpush1.msra.mxu0 0.0
    %835 = vmatprep.subr.mxu0 0.0
    %836 = vmatpush1.msra.mxu0 0.0
    %837 = vmatprep.subr.mxu0 0.0
    %838 = vmatpush1.msra.mxu0 0.0
    %839 = vmatprep.subr.mxu0 0.0
    %840 = vmatpush1.msra.mxu0 0.0
    %841 = vmatprep.subr.mxu0 0.0
    %842 = vmatpush1.msra.mxu0 0.0
    %843 = vmatprep.subr.mxu0 0.0
    %844 = vmatpush1.msra.mxu0 0.0
    %845 = vmatprep.subr.mxu0 0.0
    %846 = vmatpush1.msra.mxu0 0.0
    %847 = vmatprep.subr.mxu0 0.0
    %848 = vmatpush1.msra.mxu0 0.0
    %849 = vmatprep.subr.mxu0 0.0
    %850 = vmatpush1.msra.mxu0 0.0
    %851 = vmatprep.subr.mxu0 0.0
    %852 = vmatpush1.msra.mxu0 0.0
    %853 = vmatprep.subr.mxu0 0.0
    %854 = vmatpush1.msra.mxu0 0.0
    %855 = vmatprep.subr.mxu0 0.0
    %856 = vmatpush1.msra.mxu0 0.0
    %857 = vmatprep.subr.mxu0 0.0
    %858 = vmatpush1.msra.mxu0 0.0
    %859 = vmatprep.subr.mxu0 0.0
    %860 = vmatpush1.msra.mxu0 0.0
    %861 = vmatprep.subr.mxu0 0.0
    %862 = vmatpush1.msra.mxu0 0.0
    %863 = vmatprep.subr.mxu0 0.0
    %864 = vmatpush1.msra.mxu0 0.0
    %865 = vmatprep.mubr.f32.mxu0 0.0
    %866 = vmatmul.mubr.f32.gmra.mrb[0].mxu0 %v799
    %v867 = vpop.f32.mrb[0].mxu0
    %v868 = vadd.f32 %v796, %v867
    %v869 = vpop.f32.mrb[0].mxu0
    %870 = vdwg.mxu0
    %vm871 = vcmask 1041408
    %v872 = vsel %vm871, %v868, -inf
    %873 = vmax.xlane.f32.xlu0 %v872
    %v874 = vpop.xlane.xlu0 %873
    %v875 = vsub.f32 %v868, %v874
    %v876 = vmul.f32 %v875, 1.442695
    %v877 = vpow.pop %v876
    %v878 = vsel %vm871, %v877, 0.0
    %879 = vadd.xlane.f32.xlu0 %v878
    %v880 = vpop.xlane.xlu0 %879
    %v881 = vlog2.pop %v880
    %v882 = vmul.f32 %v881, 0.6931472
    %v883 = vadd.f32 %v874, %v882
    %v884 = vsub.f32 %v868, %v883
    %885 = vst [vmem:[#allocation11] sm:$0x3] %v884
    // Predicated region
    $region42: #{rnn_forward.1} parent=1 // pred_check
      _
    $region43: #{rnn_forward.1} parent=1 // pred_check_branch
      %887 = sbr.rel (0) target = $region45
    $region44: #{rnn_forward.1} parent=1 // pred_region
      %s889 = ssub.s32 32, 32
      %890 = vsyncadd [#allocation5], %s889
      %s892 = sshll.u32 [#allocation11], 4
      %s893 = int_to_ptr.vmem [resolvable:$true] %s892
      %895 = dma.vmem_to_hbm [thread:$0]  %s893, 32, %s6, [#allocation5]
    $region45: #{rnn_forward.1} parent=1 // pred_fallthru
      _
    // Predicated region
    $region46: #{rnn_forward.1} parent=1 // pred_check
      _
    $region47: #{rnn_forward.1} parent=1 // pred_check_branch
      %897 = sbr.rel (0) target = $region49
    $region48: #{rnn_forward.1} parent=1 // pred_region
      %898 = dma.done [#allocation5], 32
    $region49: #{rnn_forward.1} parent=1 // pred_fallthru
      _
    %899 = vsyncpa [#allocation4], 1
    %900 = vsyncpa [#allocation7], 1
    %901 = vsyncpa [#allocation10], 1
    %902 = vsyncpa [#allocation5], 1

</llo_original>
